<compile_context>
chip_gen: v5e
topology: v5e:2x2
jax: 0.10.0
libtpu: 0.0.40
codegen_flags: <defaults>
</compile_context>

<pallas_src>
import functools

import jax
import jax.numpy as jnp
from jax import lax
from jax.experimental import pallas as pl
from jax.experimental.pallas import tpu as pltpu


# ----------------------------- in-kernel helpers ----------------------------- #

def _layernorm(v, g, b, eps=1e-5):
    mu = jnp.mean(v, axis=-1, keepdims=True)
    c = v - mu
    var = jnp.mean(c * c, axis=-1, keepdims=True)
    return c * lax.rsqrt(var + eps) * g + b


def _gelu_tanh(x):
    # TODO(synk): tanh-form GELU (max abs err ~1e-3 vs torch.nn.GELU()'s exact erf
    #             form); keeps the transcendental on the otherwise-idle EUP slot.
    c = 0.7978845608028654  # sqrt(2/pi)
    return 0.5 * x * (1.0 + jnp.tanh(c * (x + 0.044715 * x * x * x)))


# --------------------------------- kernel ------------------------------------ #

def block_kernel(x_ref, ln1g_ref, ln1b_ref, wq_ref, wk_ref, wv_ref,
                 wproj_ref, bproj_ref, ln2g_ref, ln2b_ref,
                 w1_ref, b1_ref, w2_ref, b2_ref, out_ref, attn_scratch,
                 *, batch, seq, num_heads, scale):
    """Single invocation over the whole token slab.  x_ref: (B*N, C)."""
    T, C = x_ref.shape
    H = num_heads
    hd = C // H
    B, N = batch, seq

    x = x_ref[...].astype(jnp.float32)                                  # (T, C)

    # ---------------- attention branch (pre-norm) ----------------
    xn = _layernorm(x, ln1g_ref[...], ln1b_ref[...])                    # (T, C) f32
    xh = jnp.broadcast_to(xn.astype(jnp.bfloat16)[None], (H, T, C))     # (H, T, C)

    # Head-batched Q/K/V projections (weights pre-permuted to (H, C, hd)).
    dims = (((2,), (1,)), ((0,), (0,)))     # contract C, batch over heads
    q = lax.dot_general(xh, wq_ref[...], dims, preferred_element_type=jnp.float32)
    k = lax.dot_general(xh, wk_ref[...], dims, preferred_element_type=jnp.float32)
    v = lax.dot_general(xh, wv_ref[...], dims, preferred_element_type=jnp.float32)

    # (H, T, hd) -> (H*B, N, hd): leading-dim split/merge only (minor dim untouched).
    q = q.reshape(H * B, N, hd).astype(jnp.bfloat16)
    k = k.reshape(H * B, N, hd).astype(jnp.bfloat16)
    v = v.reshape(H * B, N, hd).astype(jnp.bfloat16)

    # Batched QK^T over all B*H heads in one MXU call.
    logits = jnp.einsum("bqd,bkd->bqk", q, k,
                        preferred_element_type=jnp.float32) * scale     # (H*B, N, N)

    # Open-coded softmax; divide goes to the EUP via approx reciprocal.
    m = jnp.max(logits, axis=-1, keepdims=True)
    e = jnp.exp(logits - m)
    denom = jnp.sum(e, axis=-1, keepdims=True)
    probs = e * pl.reciprocal(denom, approx=True)

    o = jnp.einsum("bqk,bkd->bqd", probs.astype(jnp.bfloat16), v,
                   preferred_element_type=jnp.float32)                  # (H*B, N, hd)
    o = o.reshape(H, T, hd)

    # Store-based head concat into a lane-contiguous (T, C) slab, then one
    # deep-K output projection (un-fused, K = C on the MXU).
    for h in range(H):                           # tiny static loop: stores only
        attn_scratch[:, h * hd:(h + 1) * hd] = o[h]
    attn_cat = attn_scratch[...].astype(jnp.bfloat16)                   # (T, C)
    proj = jnp.dot(attn_cat, wproj_ref[...],
                   preferred_element_type=jnp.float32) + bproj_ref[...]
    x = x + proj                                 # residual (attn/proj drop = id)

    # ---------------- MLP branch (pre-norm) ----------------
    xn2 = _layernorm(x, ln2g_ref[...], ln2b_ref[...])
    h1 = jnp.dot(xn2.astype(jnp.bfloat16), w1_ref[...],
                 preferred_element_type=jnp.float32) + b1_ref[...]
    h1 = _gelu_tanh(h1)
    h2 = jnp.dot(h1.astype(jnp.bfloat16), w2_ref[...],
                 preferred_element_type=jnp.float32) + b2_ref[...]
    x = x + h2                                   # residual (drop = id)

    out_ref[...] = x.astype(out_ref.dtype)


# --------------------------------- wrapper ----------------------------------- #

def block_forward(x, params, *, num_heads):
    """x: (B, N, C) -> (B, N, C).  Transformer Block forward (eval mode)."""
    B, N, C = x.shape
    H = num_heads
    hd = C // H
    scale = hd ** -0.5
    T = B * N

    # Pre-permute the fused QKV weight so heads land on a leading axis:
    #   (C, 3C) -> (C, 3, H, hd) -> (3, H, C, hd); cast MXU operands to bf16.
    w_qkv_h = params["w_qkv"].reshape(C, 3, H, hd).transpose(1, 2, 0, 3)
    wq = w_qkv_h[0].astype(jnp.bfloat16)   # (H, C, hd)
    wk = w_qkv_h[1].astype(jnp.bfloat16)
    wv = w_qkv_h[2].astype(jnp.bfloat16)

    kernel = functools.partial(block_kernel, batch=B, seq=N,
                               num_heads=num_heads, scale=scale)

    vmem_spec = pl.BlockSpec(memory_space=pltpu.MemorySpace.VMEM)

    out2d = pl.pallas_call(
        kernel,
        out_shape=jax.ShapeDtypeStruct((T, C), x.dtype),
        in_specs=[vmem_spec] * 14,
        out_specs=vmem_spec,
        scratch_shapes=[pltpu.VMEM((T, C), jnp.float32)],   # head-concat slab
        compiler_params=pltpu.CompilerParams(
            vmem_limit_bytes=48 * 1024 * 1024),
    )(
        x.reshape(T, C),
        params["ln1_g"], params["ln1_b"],
        wq, wk, wv,
        params["w_proj"].astype(jnp.bfloat16), params["b_proj"],
        params["ln2_g"], params["ln2_b"],
        params["w_fc1"].astype(jnp.bfloat16), params["b_fc1"],
        params["w_fc2"].astype(jnp.bfloat16), params["b_fc2"],
    )
    return out2d.reshape(B, N, C)


# ----------------------------- pure-JAX reference ---------------------------- #

def block_reference(x, p, *, num_heads):
    def ln(v, g, b, eps=1e-5):
        mu = v.mean(-1, keepdims=True)
        var = ((v - mu) ** 2).mean(-1, keepdims=True)
        return (v - mu) / jnp.sqrt(var + eps) * g + b

    B, N, C = x.shape
    hd = C // num_heads
    scale = hd ** -0.5

    xn = ln(x, p["ln1_g"], p["ln1_b"])
    qkv = xn @ p["w_qkv"]                                        # (B, N, 3C)
    qkv = qkv.reshape(B, N, 3, num_heads, hd).transpose(2, 0, 3, 1, 4)
    q, k, v = qkv[0], qkv[1], qkv[2]                             # (B, H, N, hd)
    att = jnp.einsum("bhqd,bhkd->bhqk", q, k) * scale
    att = jax.nn.softmax(att, axis=-1)
    o = jnp.einsum("bhqk,bhkd->bhqd", att, v)
    o = o.transpose(0, 2, 1, 3).reshape(B, N, C)
    x = x + (o @ p["w_proj"] + p["b_proj"])

    xn2 = ln(x, p["ln2_g"], p["ln2_b"])
    h = jax.nn.gelu(xn2 @ p["w_fc1"] + p["b_fc1"], approximate=False)
    h = h @ p["w_fc2"] + p["b_fc2"]
    return x + h


# ----------------------------------- main ------------------------------------ #

if __name__ == "__main__":
    key = jax.random.PRNGKey(0)
    B, N, C = 2, 8, 32          # batch=2, seq=8, hidden=32
    num_heads = 4
    mlp_hidden = 4 * C

    keys = jax.random.split(key, 12)

    def w(k, shape, s=0.02):
        return (s * jax.random.normal(k, shape)).astype(jnp.float32)

    params = dict(
        ln1_g=(1.0 + w(keys[0], (1, C), 0.1)).astype(jnp.float32),
        ln1_b=w(keys[1], (1, C)),
        w_qkv=w(keys[2], (C, 3 * C)),
        w_proj=w(keys[3], (C, C)),
        b_proj=w(keys[4], (1, C)),
        ln2_g=(1.0 + w(keys[5], (1, C), 0.1)).astype(jnp.float32),
        ln2_b=w(keys[6], (1, C)),
        w_fc1=w(keys[7], (C, mlp_hidden)),
        b_fc1=w(keys[8], (1, mlp_hidden)),
        w_fc2=w(keys[9], (mlp_hidden, C)),
        b_fc2=w(keys[10], (1, C)),
    )
    x = jax.random.normal(keys[11], (B, N, C), dtype=jnp.float32)

    out = block_forward(x, params, num_heads=num_heads)
    out = jax.block_until_ready(out)

    assert out.shape == (B, N, C), out.shape
    assert bool(jnp.all(jnp.isfinite(out)))

    ref = block_reference(x, params, num_heads=num_heads)
    err = float(jnp.max(jnp.abs(out - ref)))
    assert err < 2e-2, f"max abs error vs reference: {err}"

    print("KERNEL_OK")
</pallas_src>

<mosaic_0001>
module attributes {stable_mosaic.version = 11 : i64} {
  func.func @block_kernel(%arg0: memref<16x32xf32, #tpu.memory_space<vmem>>, %arg1: memref<1x32xf32, #tpu.memory_space<vmem>>, %arg2: memref<1x32xf32, #tpu.memory_space<vmem>>, %arg3: memref<4x32x8xbf16, #tpu.memory_space<vmem>>, %arg4: memref<4x32x8xbf16, #tpu.memory_space<vmem>>, %arg5: memref<4x32x8xbf16, #tpu.memory_space<vmem>>, %arg6: memref<32x32xbf16, #tpu.memory_space<vmem>>, %arg7: memref<1x32xf32, #tpu.memory_space<vmem>>, %arg8: memref<1x32xf32, #tpu.memory_space<vmem>>, %arg9: memref<1x32xf32, #tpu.memory_space<vmem>>, %arg10: memref<32x128xbf16, #tpu.memory_space<vmem>>, %arg11: memref<1x128xf32, #tpu.memory_space<vmem>>, %arg12: memref<128x32xbf16, #tpu.memory_space<vmem>>, %arg13: memref<1x32xf32, #tpu.memory_space<vmem>>, %arg14: memref<16x32xf32, #tpu.memory_space<vmem>>, %arg15: memref<16x32xf32, #tpu.memory_space<vmem>>) attributes {dimension_semantics = [], scalar_prefetch = 0 : i64, scratch_operands = 1 : i64, tpu.core_type = #tpu.core_type<tc>} {
    %c0 = arith.constant 0 : index
    %c0_0 = arith.constant 0 : index
    %0 = vector.load %arg0[%c0, %c0_0] : memref<16x32xf32, #tpu.memory_space<vmem>>, vector<16x32xf32>
    %c0_1 = arith.constant 0 : index
    %c0_2 = arith.constant 0 : index
    %1 = vector.load %arg1[%c0_1, %c0_2] : memref<1x32xf32, #tpu.memory_space<vmem>>, vector<1x32xf32>
    %c0_3 = arith.constant 0 : index
    %c0_4 = arith.constant 0 : index
    %2 = vector.load %arg2[%c0_3, %c0_4] : memref<1x32xf32, #tpu.memory_space<vmem>>, vector<1x32xf32>
    %cst = arith.constant dense<0.000000e+00> : vector<16xf32>
    %3 = vector.multi_reduction <add>, %0, %cst [1] : vector<16x32xf32> to vector<16xf32>
    %4 = vector.shape_cast %3 : vector<16xf32> to vector<16x1xf32>
    %cst_5 = arith.constant 3.200000e+01 : f32
    %5 = vector.broadcast %cst_5 : f32 to vector<16x1xf32>
    %6 = arith.divf %4, %5 : vector<16x1xf32>
    %7 = vector.broadcast %6 : vector<16x1xf32> to vector<16x32xf32>
    %8 = arith.subf %0, %7 : vector<16x32xf32>
    %9 = arith.mulf %8, %8 : vector<16x32xf32>
    %cst_6 = arith.constant dense<0.000000e+00> : vector<16xf32>
    %10 = vector.multi_reduction <add>, %9, %cst_6 [1] : vector<16x32xf32> to vector<16xf32>
    %11 = vector.shape_cast %10 : vector<16xf32> to vector<16x1xf32>
    %cst_7 = arith.constant 3.200000e+01 : f32
    %12 = vector.broadcast %cst_7 : f32 to vector<16x1xf32>
    %13 = arith.divf %11, %12 : vector<16x1xf32>
    %cst_8 = arith.constant 9.99999974E-6 : f32
    %14 = vector.broadcast %cst_8 : f32 to vector<16x1xf32>
    %15 = arith.addf %13, %14 : vector<16x1xf32>
    %16 = math.rsqrt %15 : vector<16x1xf32>
    %17 = vector.broadcast %16 : vector<16x1xf32> to vector<16x32xf32>
    %18 = arith.mulf %8, %17 : vector<16x32xf32>
    %19 = vector.broadcast %1 : vector<1x32xf32> to vector<16x32xf32>
    %20 = arith.mulf %18, %19 : vector<16x32xf32>
    %21 = vector.broadcast %2 : vector<1x32xf32> to vector<16x32xf32>
    %22 = arith.addf %20, %21 : vector<16x32xf32>
    %23 = arith.truncf %22 : vector<16x32xf32> to vector<16x32xbf16>
    %24 = vector.shape_cast %23 : vector<16x32xbf16> to vector<1x16x32xbf16>
    %25 = vector.shape_cast %24 : vector<1x16x32xbf16> to vector<1x16x32xbf16>
    %26 = vector.broadcast %25 : vector<1x16x32xbf16> to vector<4x16x32xbf16>
    %c0_9 = arith.constant 0 : index
    %c0_10 = arith.constant 0 : index
    %c0_11 = arith.constant 0 : index
    %27 = vector.load %arg3[%c0_9, %c0_10, %c0_11] : memref<4x32x8xbf16, #tpu.memory_space<vmem>>, vector<4x32x8xbf16>
    %cst_12 = arith.constant dense<0.000000e+00> : vector<4x16x8xf32>
    %28 = tpu.matmul %26, %27, %cst_12 {dimension_numbers = #tpu.dot_dimension_numbers<[2], [1], [1], [2], [0, 0, 0, 1, 1, 2], [0], [0]>} : vector<4x16x32xbf16>, vector<4x32x8xbf16>, vector<4x16x8xf32> -> vector<4x16x8xf32>
    %c0_13 = arith.constant 0 : index
    %c0_14 = arith.constant 0 : index
    %c0_15 = arith.constant 0 : index
    %29 = vector.load %arg4[%c0_13, %c0_14, %c0_15] : memref<4x32x8xbf16, #tpu.memory_space<vmem>>, vector<4x32x8xbf16>
    %cst_16 = arith.constant dense<0.000000e+00> : vector<4x16x8xf32>
    %30 = tpu.matmul %26, %29, %cst_16 {dimension_numbers = #tpu.dot_dimension_numbers<[2], [1], [1], [2], [0, 0, 0, 1, 1, 2], [0], [0]>} : vector<4x16x32xbf16>, vector<4x32x8xbf16>, vector<4x16x8xf32> -> vector<4x16x8xf32>
    %c0_17 = arith.constant 0 : index
    %c0_18 = arith.constant 0 : index
    %c0_19 = arith.constant 0 : index
    %31 = vector.load %arg5[%c0_17, %c0_18, %c0_19] : memref<4x32x8xbf16, #tpu.memory_space<vmem>>, vector<4x32x8xbf16>
    %cst_20 = arith.constant dense<0.000000e+00> : vector<4x16x8xf32>
    %32 = tpu.matmul %26, %31, %cst_20 {dimension_numbers = #tpu.dot_dimension_numbers<[2], [1], [1], [2], [0, 0, 0, 1, 1, 2], [0], [0]>} : vector<4x16x32xbf16>, vector<4x32x8xbf16>, vector<4x16x8xf32> -> vector<4x16x8xf32>
    %33 = vector.shape_cast %28 : vector<4x16x8xf32> to vector<8x8x8xf32>
    %34 = arith.truncf %33 : vector<8x8x8xf32> to vector<8x8x8xbf16>
    %35 = vector.shape_cast %30 : vector<4x16x8xf32> to vector<8x8x8xf32>
    %36 = arith.truncf %35 : vector<8x8x8xf32> to vector<8x8x8xbf16>
    %37 = vector.shape_cast %32 : vector<4x16x8xf32> to vector<8x8x8xf32>
    %38 = arith.truncf %37 : vector<8x8x8xf32> to vector<8x8x8xbf16>
    "tpu.trace_start"() <{level = 10 : i32, message = "bqd,bkd->bqk"}> : () -> ()
    %cst_21 = arith.constant dense<0.000000e+00> : vector<8x8x8xf32>
    %39 = tpu.matmul %34, %36, %cst_21 {dimension_numbers = #tpu.dot_dimension_numbers<[2], [2], [1], [1], [0, 0, 0, 1, 1, 1], [0], [0]>} : vector<8x8x8xbf16>, vector<8x8x8xbf16>, vector<8x8x8xf32> -> vector<8x8x8xf32>
    "tpu.trace_stop"() : () -> ()
    %cst_22 = arith.constant 0.353553385 : f32
    %40 = vector.broadcast %cst_22 : f32 to vector<8x8x8xf32>
    %41 = arith.mulf %39, %40 : vector<8x8x8xf32>
    %cst_23 = arith.constant dense<0xFF800000> : vector<8x8xf32>
    %42 = vector.multi_reduction <maximumf>, %41, %cst_23 [2] : vector<8x8x8xf32> to vector<8x8xf32>
    %43 = vector.shape_cast %42 : vector<8x8xf32> to vector<8x8x1xf32>
    %44 = vector.broadcast %43 : vector<8x8x1xf32> to vector<8x8x8xf32>
    %45 = arith.subf %41, %44 : vector<8x8x8xf32>
    %46 = math.exp %45 : vector<8x8x8xf32>
    %cst_24 = arith.constant dense<0.000000e+00> : vector<8x8xf32>
    %47 = vector.multi_reduction <add>, %46, %cst_24 [2] : vector<8x8x8xf32> to vector<8x8xf32>
    %48 = vector.shape_cast %47 : vector<8x8xf32> to vector<8x8x1xf32>
    %49 = tpu.reciprocal %48 {approx = true} : vector<8x8x1xf32> -> vector<8x8x1xf32>
    %50 = vector.broadcast %49 : vector<8x8x1xf32> to vector<8x8x8xf32>
    %51 = arith.mulf %46, %50 : vector<8x8x8xf32>
    %52 = arith.truncf %51 : vector<8x8x8xf32> to vector<8x8x8xbf16>
    "tpu.trace_start"() <{level = 10 : i32, message = "bqk,bkd->bqd"}> : () -> ()
    %cst_25 = arith.constant dense<0.000000e+00> : vector<8x8x8xf32>
    %53 = tpu.matmul %52, %38, %cst_25 {dimension_numbers = #tpu.dot_dimension_numbers<[2], [1], [1], [2], [0, 0, 0, 1, 1, 2], [0], [0]>} : vector<8x8x8xbf16>, vector<8x8x8xbf16>, vector<8x8x8xf32> -> vector<8x8x8xf32>
    "tpu.trace_stop"() : () -> ()
    %54 = vector.shape_cast %53 : vector<8x8x8xf32> to vector<4x16x8xf32>
    %55 = vector.extract_strided_slice %54 {offsets = [0, 0, 0], sizes = [1, 16, 8], strides = [1, 1, 1]} : vector<4x16x8xf32> to vector<1x16x8xf32>
    %56 = vector.shape_cast %55 : vector<1x16x8xf32> to vector<16x8xf32>
    %c0_26 = arith.constant 0 : index
    %c0_27 = arith.constant 0 : index
    %57 = vector.load %arg15[%c0_26, %c0_27] : memref<16x32xf32, #tpu.memory_space<vmem>>, vector<16x8xf32>
    tpu.vector_store %arg15[%c0_26, %c0_27], %56 {strides = array<i32>} : memref<16x32xf32, #tpu.memory_space<vmem>>, vector<16x8xf32>,
    %58 = vector.extract_strided_slice %54 {offsets = [1, 0, 0], sizes = [1, 16, 8], strides = [1, 1, 1]} : vector<4x16x8xf32> to vector<1x16x8xf32>
    %59 = vector.shape_cast %58 : vector<1x16x8xf32> to vector<16x8xf32>
    %c0_28 = arith.constant 0 : index
    %c8 = arith.constant 8 : index
    %60 = vector.load %arg15[%c0_28, %c8] : memref<16x32xf32, #tpu.memory_space<vmem>>, vector<16x8xf32>
    tpu.vector_store %arg15[%c0_28, %c8], %59 {strides = array<i32>} : memref<16x32xf32, #tpu.memory_space<vmem>>, vector<16x8xf32>,
    %61 = vector.extract_strided_slice %54 {offsets = [2, 0, 0], sizes = [1, 16, 8], strides = [1, 1, 1]} : vector<4x16x8xf32> to vector<1x16x8xf32>
    %62 = vector.shape_cast %61 : vector<1x16x8xf32> to vector<16x8xf32>
    %c0_29 = arith.constant 0 : index
    %c16 = arith.constant 16 : index
    %63 = vector.load %arg15[%c0_29, %c16] : memref<16x32xf32, #tpu.memory_space<vmem>>, vector<16x8xf32>
    tpu.vector_store %arg15[%c0_29, %c16], %62 {strides = array<i32>} : memref<16x32xf32, #tpu.memory_space<vmem>>, vector<16x8xf32>,
    %64 = vector.extract_strided_slice %54 {offsets = [3, 0, 0], sizes = [1, 16, 8], strides = [1, 1, 1]} : vector<4x16x8xf32> to vector<1x16x8xf32>
    %65 = vector.shape_cast %64 : vector<1x16x8xf32> to vector<16x8xf32>
    %c0_30 = arith.constant 0 : index
    %c24 = arith.constant 24 : index
    %66 = vector.load %arg15[%c0_30, %c24] : memref<16x32xf32, #tpu.memory_space<vmem>>, vector<16x8xf32>
    tpu.vector_store %arg15[%c0_30, %c24], %65 {strides = array<i32>} : memref<16x32xf32, #tpu.memory_space<vmem>>, vector<16x8xf32>,
    %c0_31 = arith.constant 0 : index
    %c0_32 = arith.constant 0 : index
    %67 = vector.load %arg15[%c0_31, %c0_32] : memref<16x32xf32, #tpu.memory_space<vmem>>, vector<16x32xf32>
    %68 = arith.truncf %67 : vector<16x32xf32> to vector<16x32xbf16>
    %c0_33 = arith.constant 0 : index
    %c0_34 = arith.constant 0 : index
    %69 = vector.load %arg6[%c0_33, %c0_34] : memref<32x32xbf16, #tpu.memory_space<vmem>>, vector<32x32xbf16>
    %cst_35 = arith.constant dense<0.000000e+00> : vector<16x32xf32>
    %70 = tpu.matmul %68, %69, %cst_35 {dimension_numbers = #tpu.dot_dimension_numbers<[1], [0], [0], [1], [0, 0, 1, 1], [], []>} : vector<16x32xbf16>, vector<32x32xbf16>, vector<16x32xf32> -> vector<16x32xf32>
    %c0_36 = arith.constant 0 : index
    %c0_37 = arith.constant 0 : index
    %71 = vector.load %arg7[%c0_36, %c0_37] : memref<1x32xf32, #tpu.memory_space<vmem>>, vector<1x32xf32>
    %72 = vector.broadcast %71 : vector<1x32xf32> to vector<16x32xf32>
    %73 = arith.addf %70, %72 : vector<16x32xf32>
    %74 = arith.addf %0, %73 : vector<16x32xf32>
    %c0_38 = arith.constant 0 : index
    %c0_39 = arith.constant 0 : index
    %75 = vector.load %arg8[%c0_38, %c0_39] : memref<1x32xf32, #tpu.memory_space<vmem>>, vector<1x32xf32>
    %c0_40 = arith.constant 0 : index
    %c0_41 = arith.constant 0 : index
    %76 = vector.load %arg9[%c0_40, %c0_41] : memref<1x32xf32, #tpu.memory_space<vmem>>, vector<1x32xf32>
    %cst_42 = arith.constant dense<0.000000e+00> : vector<16xf32>
    %77 = vector.multi_reduction <add>, %74, %cst_42 [1] : vector<16x32xf32> to vector<16xf32>
    %78 = vector.shape_cast %77 : vector<16xf32> to vector<16x1xf32>
    %cst_43 = arith.constant 3.200000e+01 : f32
    %79 = vector.broadcast %cst_43 : f32 to vector<16x1xf32>
    %80 = arith.divf %78, %79 : vector<16x1xf32>
    %81 = vector.broadcast %80 : vector<16x1xf32> to vector<16x32xf32>
    %82 = arith.subf %74, %81 : vector<16x32xf32>
    %83 = arith.mulf %82, %82 : vector<16x32xf32>
    %cst_44 = arith.constant dense<0.000000e+00> : vector<16xf32>
    %84 = vector.multi_reduction <add>, %83, %cst_44 [1] : vector<16x32xf32> to vector<16xf32>
    %85 = vector.shape_cast %84 : vector<16xf32> to vector<16x1xf32>
    %cst_45 = arith.constant 3.200000e+01 : f32
    %86 = vector.broadcast %cst_45 : f32 to vector<16x1xf32>
    %87 = arith.divf %85, %86 : vector<16x1xf32>
    %cst_46 = arith.constant 9.99999974E-6 : f32
    %88 = vector.broadcast %cst_46 : f32 to vector<16x1xf32>
    %89 = arith.addf %87, %88 : vector<16x1xf32>
    %90 = math.rsqrt %89 : vector<16x1xf32>
    %91 = vector.broadcast %90 : vector<16x1xf32> to vector<16x32xf32>
    %92 = arith.mulf %82, %91 : vector<16x32xf32>
    %93 = vector.broadcast %75 : vector<1x32xf32> to vector<16x32xf32>
    %94 = arith.mulf %92, %93 : vector<16x32xf32>
    %95 = vector.broadcast %76 : vector<1x32xf32> to vector<16x32xf32>
    %96 = arith.addf %94, %95 : vector<16x32xf32>
    %97 = arith.truncf %96 : vector<16x32xf32> to vector<16x32xbf16>
    %c0_47 = arith.constant 0 : index
    %c0_48 = arith.constant 0 : index
    %98 = vector.load %arg10[%c0_47, %c0_48] : memref<32x128xbf16, #tpu.memory_space<vmem>>, vector<32x128xbf16>
    %cst_49 = arith.constant dense<0.000000e+00> : vector<16x128xf32>
    %99 = tpu.matmul %97, %98, %cst_49 {dimension_numbers = #tpu.dot_dimension_numbers<[1], [0], [0], [1], [0, 0, 1, 1], [], []>} : vector<16x32xbf16>, vector<32x128xbf16>, vector<16x128xf32> -> vector<16x128xf32>
    %c0_50 = arith.constant 0 : index
    %c0_51 = arith.constant 0 : index
    %100 = vector.load %arg11[%c0_50, %c0_51] : memref<1x128xf32, #tpu.memory_space<vmem>>, vector<1x128xf32>
    %101 = vector.broadcast %100 : vector<1x128xf32> to vector<16x128xf32>
    %102 = arith.addf %99, %101 : vector<16x128xf32>
    %cst_52 = arith.constant 5.000000e-01 : f32
    %103 = vector.broadcast %cst_52 : f32 to vector<16x128xf32>
    %104 = arith.mulf %103, %102 : vector<16x128xf32>
    %cst_53 = arith.constant 4.471500e-02 : f32
    %105 = vector.broadcast %cst_53 : f32 to vector<16x128xf32>
    %106 = arith.mulf %105, %102 : vector<16x128xf32>
    %107 = arith.mulf %106, %102 : vector<16x128xf32>
    %108 = arith.mulf %107, %102 : vector<16x128xf32>
    %109 = arith.addf %102, %108 : vector<16x128xf32>
    %cst_54 = arith.constant 0.797884583 : f32
    %110 = vector.broadcast %cst_54 : f32 to vector<16x128xf32>
    %111 = arith.mulf %110, %109 : vector<16x128xf32>
    %112 = math.tanh %111 : vector<16x128xf32>
    %cst_55 = arith.constant 1.000000e+00 : f32
    %113 = vector.broadcast %cst_55 : f32 to vector<16x128xf32>
    %114 = arith.addf %113, %112 : vector<16x128xf32>
    %115 = arith.mulf %104, %114 : vector<16x128xf32>
    %116 = arith.truncf %115 : vector<16x128xf32> to vector<16x128xbf16>
    %c0_56 = arith.constant 0 : index
    %c0_57 = arith.constant 0 : index
    %117 = vector.load %arg12[%c0_56, %c0_57] : memref<128x32xbf16, #tpu.memory_space<vmem>>, vector<128x32xbf16>
    %cst_58 = arith.constant dense<0.000000e+00> : vector<16x32xf32>
    %118 = tpu.matmul %116, %117, %cst_58 {dimension_numbers = #tpu.dot_dimension_numbers<[1], [0], [0], [1], [0, 0, 1, 1], [], []>} : vector<16x128xbf16>, vector<128x32xbf16>, vector<16x32xf32> -> vector<16x32xf32>
    %c0_59 = arith.constant 0 : index
    %c0_60 = arith.constant 0 : index
    %119 = vector.load %arg13[%c0_59, %c0_60] : memref<1x32xf32, #tpu.memory_space<vmem>>, vector<1x32xf32>
    %120 = vector.broadcast %119 : vector<1x32xf32> to vector<16x32xf32>
    %121 = arith.addf %118, %120 : vector<16x32xf32>
    %122 = arith.addf %74, %121 : vector<16x32xf32>
    %c0_61 = arith.constant 0 : index
    %c0_62 = arith.constant 0 : index
    %123 = vector.load %arg14[%c0_61, %c0_62] : memref<16x32xf32, #tpu.memory_space<vmem>>, vector<16x32xf32>
    tpu.vector_store %arg14[%c0_61, %c0_62], %122 {strides = array<i32>} : memref<16x32xf32, #tpu.memory_space<vmem>>, vector<16x32xf32>,
    return
  }
}

</mosaic_0001>

<llo_original>
// kernel: tpu_custom_call.1
$region0: #{tpu_custom_call.1}
  #allocation0 [shape = 'u32[]', space=smem, size = 0x4, offset = 0x4, fixed_abs, tag = 'smem constant byte address 0x4 - core index']
  #allocation1 [shape = 'u32[72,128]{1,0:T(1,128)}', space=vmem, size = 0x9000, scoped, tag = 'internal scratch']
  #allocation2 [shape = 'f32[16,32]{1,0:T(8,128)}', space=vmem, size = 0x2000, scoped, tag = 'scratch operand']
  %s0 = inlined_call_operand.vmem [shape: f32[16,32], index: 0, kind: input, shape index: {}]
  %s1 = inlined_call_operand.vmem [shape: f32[1,32], index: 1, kind: input, shape index: {}]
  %s2 = inlined_call_operand.vmem [shape: f32[1,32], index: 2, kind: input, shape index: {}]
  %s3 = inlined_call_operand.vmem [shape: bf16[4,32,8], index: 3, kind: input, shape index: {}]
  %s4 = inlined_call_operand.vmem [shape: bf16[4,32,8], index: 4, kind: input, shape index: {}]
  %s5 = inlined_call_operand.vmem [shape: bf16[4,32,8], index: 5, kind: input, shape index: {}]
  %s6 = inlined_call_operand.vmem [shape: bf16[32,32], index: 6, kind: input, shape index: {}]
  %s7 = inlined_call_operand.vmem [shape: f32[1,32], index: 7, kind: input, shape index: {}]
  %s8 = inlined_call_operand.vmem [shape: f32[1,32], index: 8, kind: input, shape index: {}]
  %s9 = inlined_call_operand.vmem [shape: f32[1,32], index: 9, kind: input, shape index: {}]
  %s10 = inlined_call_operand.vmem [shape: bf16[32,128], index: 10, kind: input, shape index: {}]
  %s11 = inlined_call_operand.vmem [shape: f32[1,128], index: 11, kind: input, shape index: {}]
  %s12 = inlined_call_operand.vmem [shape: bf16[128,32], index: 12, kind: input, shape index: {}]
  %s13 = inlined_call_operand.vmem [shape: f32[1,32], index: 13, kind: input, shape index: {}]
  %s14 = inlined_call_operand.hbm [shape: f32[16,32], index: 14, kind: output, shape index: {}]
  %s15 = sld [smem:[#allocation0]]
  $region66: #{tpu_custom_call.1} parent=0
    _
  %s17 = ssub.s32 1, %s15
  %s18 = scalar_select 0, %s17, %s15
  $region1: #{tpu_custom_call.1} parent=0
    #allocation3 [shape = 'u8[8192]{0}', space=vmem, size = 0x2000, scoped, tag = 'output window, operand 0, single buffered']
    #allocation4 [shape = 's32[1]{0}', space=sflag, size = 0x4, scoped, tag = 'scoped memory for tpu_custom_call.1']
    %19 = vsyncpa [#allocation4], 0
    // Predicated region
    $region2: #{tpu_custom_call.1} parent=1 // pred_check
      _
    $region3: #{tpu_custom_call.1} parent=1 // pred_check_branch
      %21 = sbr.rel (0) target = $region5
    $region4: #{tpu_custom_call.1} parent=1 // pred_region
      _
    $region5: #{tpu_custom_call.1} parent=1 // pred_fallthru
      _
    // Predicated region
    $region6: #{tpu_custom_call.1} parent=1 // pred_check
      _
    $region7: #{tpu_custom_call.1} parent=1 // pred_check_branch
      %23 = sbr.rel (0) target = $region9
    $region8: #{tpu_custom_call.1} parent=1 // pred_region
      _
    $region9: #{tpu_custom_call.1} parent=1 // pred_fallthru
      _
    // Predicated region
    $region10: #{tpu_custom_call.1} parent=1 // pred_check
      _
    $region11: #{tpu_custom_call.1} parent=1 // pred_check_branch
      %25 = sbr.rel (0) target = $region13
    $region12: #{tpu_custom_call.1} parent=1 // pred_region
      _
    $region13: #{tpu_custom_call.1} parent=1 // pred_fallthru
      _
    // Predicated region
    $region14: #{tpu_custom_call.1} parent=1 // pred_check
      _
    $region15: #{tpu_custom_call.1} parent=1 // pred_check_branch
      %27 = sbr.rel (0) target = $region17
    $region16: #{tpu_custom_call.1} parent=1 // pred_region
      _
    $region17: #{tpu_custom_call.1} parent=1 // pred_fallthru
      _
    // Predicated region
    $region18: #{tpu_custom_call.1} parent=1 // pred_check
      _
    $region19: #{tpu_custom_call.1} parent=1 // pred_check_branch
      %29 = sbr.rel (0) target = $region21
    $region20: #{tpu_custom_call.1} parent=1 // pred_region
      _
    $region21: #{tpu_custom_call.1} parent=1 // pred_fallthru
      _
    // Predicated region
    $region22: #{tpu_custom_call.1} parent=1 // pred_check
      _
    $region23: #{tpu_custom_call.1} parent=1 // pred_check_branch
      %31 = sbr.rel (0) target = $region25
    $region24: #{tpu_custom_call.1} parent=1 // pred_region
      _
    $region25: #{tpu_custom_call.1} parent=1 // pred_fallthru
      _
    // Predicated region
    $region26: #{tpu_custom_call.1} parent=1 // pred_check
      _
    $region27: #{tpu_custom_call.1} parent=1 // pred_check_branch
      %33 = sbr.rel (0) target = $region29
    $region28: #{tpu_custom_call.1} parent=1 // pred_region
      _
    $region29: #{tpu_custom_call.1} parent=1 // pred_fallthru
      _
    // Predicated region
    $region30: #{tpu_custom_call.1} parent=1 // pred_check
      _
    $region31: #{tpu_custom_call.1} parent=1 // pred_check_branch
      %35 = sbr.rel (0) target = $region33
    $region32: #{tpu_custom_call.1} parent=1 // pred_region
      _
    $region33: #{tpu_custom_call.1} parent=1 // pred_fallthru
      _
    // Predicated region
    $region34: #{tpu_custom_call.1} parent=1 // pred_check
      _
    $region35: #{tpu_custom_call.1} parent=1 // pred_check_branch
      %37 = sbr.rel (0) target = $region37
    $region36: #{tpu_custom_call.1} parent=1 // pred_region
      _
    $region37: #{tpu_custom_call.1} parent=1 // pred_fallthru
      _
    // Predicated region
    $region38: #{tpu_custom_call.1} parent=1 // pred_check
      _
    $region39: #{tpu_custom_call.1} parent=1 // pred_check_branch
      %39 = sbr.rel (0) target = $region41
    $region40: #{tpu_custom_call.1} parent=1 // pred_region
      _
    $region41: #{tpu_custom_call.1} parent=1 // pred_fallthru
      _
    // Predicated region
    $region42: #{tpu_custom_call.1} parent=1 // pred_check
      _
    $region43: #{tpu_custom_call.1} parent=1 // pred_check_branch
      %41 = sbr.rel (0) target = $region45
    $region44: #{tpu_custom_call.1} parent=1 // pred_region
      _
    $region45: #{tpu_custom_call.1} parent=1 // pred_fallthru
      _
    // Predicated region
    $region46: #{tpu_custom_call.1} parent=1 // pred_check
      _
    $region47: #{tpu_custom_call.1} parent=1 // pred_check_branch
      %43 = sbr.rel (0) target = $region49
    $region48: #{tpu_custom_call.1} parent=1 // pred_region
      _
    $region49: #{tpu_custom_call.1} parent=1 // pred_fallthru
      _
    // Predicated region
    $region50: #{tpu_custom_call.1} parent=1 // pred_check
      _
    $region51: #{tpu_custom_call.1} parent=1 // pred_check_branch
      %45 = sbr.rel (0) target = $region53
    $region52: #{tpu_custom_call.1} parent=1 // pred_region
      _
    $region53: #{tpu_custom_call.1} parent=1 // pred_fallthru
      _
    // Predicated region
    $region54: #{tpu_custom_call.1} parent=1 // pred_check
      _
    $region55: #{tpu_custom_call.1} parent=1 // pred_check_branch
      %47 = sbr.rel (0) target = $region57
    $region56: #{tpu_custom_call.1} parent=1 // pred_region
      _
    $region57: #{tpu_custom_call.1} parent=1 // pred_fallthru
      _
    %v49 = vld [vmem:[%s0] sm:$0xff]
    %v50 = vld [vmem:[%s0 + $0x8] sm:$0xff]
    %v51 = vld [vmem:[%s1] sm:$0x1]
    %v52 = vld [vmem:[%s2] sm:$0x1]
    %vm53 = vcmask 261120
    %v54 = vsel %vm53, %v49, 0.0
    %55 = vadd.xlane.f32.xlu0 %v54
    %v56 = vpop.xlane.xlu0 %55
    %v57 = vsel %vm53, %v50, 0.0
    %58 = vadd.xlane.f32.xlu0 %v57
    %v59 = vpop.xlane.xlu0 %58
    %v60 = vrcp.pop 32.0
    %v61 = vmul.f32 32.0, %v60
    %v62 = vsub.f32 1.0, %v61
    %v63 = vmul.f32 %v60, %v62
    %v64 = vadd.f32 %v60, %v63
    %vm65 = vweird.f32 %v60
    %v66 = vsel %vm65, %v60, %v64
    %v67 = vmul.f32 %v56, %v66
    %v68 = vmul.f32 %v59, %v66
    %v69 = vsub.f32 %v49, %v67
    %v70 = vsub.f32 %v50, %v68
    %v71 = vmul.f32 %v69, %v69
    %v72 = vmul.f32 %v70, %v70
    %v73 = vsel %vm53, %v71, 0.0
    %74 = vadd.xlane.f32.xlu0 %v73
    %v75 = vpop.xlane.xlu0 %74
    %v76 = vsel %vm53, %v72, 0.0
    %77 = vadd.xlane.f32.xlu0 %v76
    %v78 = vpop.xlane.xlu0 %77
    %v79 = vmul.f32 %v75, %v66
    %v80 = vmul.f32 %v78, %v66
    %v81 = vadd.f32 %v79, 1e-05
    %v82 = vadd.f32 %v80, 1e-05
    %v83 = vrsqrt.pop %v81
    %v84 = vmul.f32 %v83, %v81
    %v85 = vmul.f32 %v84, %v83
    %v86 = vmul.f32 0.5, %v85
    %v87 = vsub.f32 1.5, %v86
    %v88 = vmul.f32 %v83, %v87
    %vm89 = vweird.f32 %v81
    %vm90 = vweird.f32 %v83
    %vm91 = vmor %vm89, %vm90
    %v92 = vsel %vm91, %v83, %v88
    %v93 = vrsqrt.pop %v82
    %v94 = vmul.f32 %v93, %v82
    %v95 = vmul.f32 %v94, %v93
    %v96 = vmul.f32 0.5, %v95
    %v97 = vsub.f32 1.5, %v96
    %v98 = vmul.f32 %v93, %v97
    %vm99 = vweird.f32 %v82
    %vm100 = vweird.f32 %v93
    %vm101 = vmor %vm99, %vm100
    %v102 = vsel %vm101, %v93, %v98
    %v103 = vmul.f32 %v69, %v92
    %v104 = vmul.f32 %v70, %v102
    %v106 = vperm.slane %v51, 0
    %v108 = vmul.f32 %v103, %v106
    %v109 = vmul.f32 %v104, %v106
    %v111 = vperm.slane %v52, 0
    %v113 = vadd.f32 %v108, %v111
    %v114 = vadd.f32 %v109, %v111
    %v115 = vpack.c.bf16 %v113, %v113
    %v116 = vpack.c.bf16 %v114, %v114
    %v117 = vld [vmem:[%s3] sm:$0xf]
    %v118 = vld [vmem:[%s3 + $0x4] sm:$0xf]
    %v119 = vld [vmem:[%s3 + $0x8] sm:$0xf]
    %v120 = vld [vmem:[%s3 + $0xc] sm:$0xf]
    %v121 = vld [vmem:[%s3 + $0x10] sm:$0xf]
    %v122 = vld [vmem:[%s3 + $0x14] sm:$0xf]
    %v123 = vld [vmem:[%s3 + $0x18] sm:$0xf]
    %v124 = vld [vmem:[%s3 + $0x1c] sm:$0xf]
    %v125 = vld [vmem:[%s3 + $0x20] sm:$0xf]
    %v126 = vld [vmem:[%s3 + $0x24] sm:$0xf]
    %v127 = vld [vmem:[%s3 + $0x28] sm:$0xf]
    %v128 = vld [vmem:[%s3 + $0x2c] sm:$0xf]
    %v129 = vld [vmem:[%s3 + $0x30] sm:$0xf]
    %v130 = vld [vmem:[%s3 + $0x34] sm:$0xf]
    %v131 = vld [vmem:[%s3 + $0x38] sm:$0xf]
    %v132 = vld [vmem:[%s3 + $0x3c] sm:$0xf]
    %v135 = vunpack.c.l.b16 %v115
    %v136 = vunpack.c.l.b16 %v116
    %v137 = vpack.c.b16 %v136, %v135
    %v142 = vunpack.c.l.b16 %v117
    %v143 = vunpack.c.l.b16 %v118
    %v144 = vunpack.c.l.b16 %v119
    %v145 = vunpack.c.l.b16 %v120
    %v146 = vpack.c.b16 %v143, %v142
    %v147 = vpack.c.b16 %v145, %v144
    %v151 = vsel %vm53, %v137, 0
    %153 = vmatpush.bf16.msra.mxu0 0
    %154 = vmatpush.bf16.msra.mxu0 0
    %155 = vmatpush.bf16.msra.mxu0 0
    %156 = vmatpush.bf16.msra.mxu0 0
    %157 = vmatpush.bf16.msra.mxu0 0
    %158 = vmatpush.bf16.msra.mxu0 0
    %159 = vmatpush.bf16.msra.mxu0 %v147
    %160 = vmatpush.bf16.msra.mxu0 %v146
    %161 = vmatmul.bf16.gmra.mxu0 %v151
    %v162 = vpop.f32.mrf.mxu0
    %v163 = vadd.f32 0.0, %v162
    %v164 = vpop.f32.mrf.mxu0
    %v165 = vadd.f32 0.0, %v164
    %166 = vdwg.mxu0
    %v171 = vunpack.c.l.b16 %v121
    %v172 = vunpack.c.l.b16 %v122
    %v173 = vunpack.c.l.b16 %v123
    %v174 = vunpack.c.l.b16 %v124
    %v175 = vpack.c.b16 %v172, %v171
    %v176 = vpack.c.b16 %v174, %v173
    %179 = vmatpush.bf16.msra.mxu0 0
    %180 = vmatpush.bf16.msra.mxu0 0
    %181 = vmatpush.bf16.msra.mxu0 0
    %182 = vmatpush.bf16.msra.mxu0 0
    %183 = vmatpush.bf16.msra.mxu0 0
    %184 = vmatpush.bf16.msra.mxu0 0
    %185 = vmatpush.bf16.msra.mxu0 %v176
    %186 = vmatpush.bf16.msra.mxu0 %v175
    %187 = vmatmul.bf16.gmra.mxu0 %v151
    %v188 = vpop.f32.mrf.mxu0
    %v189 = vadd.f32 0.0, %v188
    %v190 = vpop.f32.mrf.mxu0
    %v191 = vadd.f32 0.0, %v190
    %192 = vdwg.mxu0
    %v197 = vunpack.c.l.b16 %v125
    %v198 = vunpack.c.l.b16 %v126
    %v199 = vunpack.c.l.b16 %v127
    %v200 = vunpack.c.l.b16 %v128
    %v201 = vpack.c.b16 %v198, %v197
    %v202 = vpack.c.b16 %v200, %v199
    %205 = vmatpush.bf16.msra.mxu0 0
    %206 = vmatpush.bf16.msra.mxu0 0
    %207 = vmatpush.bf16.msra.mxu0 0
    %208 = vmatpush.bf16.msra.mxu0 0
    %209 = vmatpush.bf16.msra.mxu0 0
    %210 = vmatpush.bf16.msra.mxu0 0
    %211 = vmatpush.bf16.msra.mxu0 %v202
    %212 = vmatpush.bf16.msra.mxu0 %v201
    %213 = vmatmul.bf16.gmra.mxu0 %v151
    %v214 = vpop.f32.mrf.mxu0
    %v215 = vadd.f32 0.0, %v214
    %v216 = vpop.f32.mrf.mxu0
    %v217 = vadd.f32 0.0, %v216
    %218 = vdwg.mxu0
    %v223 = vunpack.c.l.b16 %v129
    %v224 = vunpack.c.l.b16 %v130
    %v225 = vunpack.c.l.b16 %v131
    %v226 = vunpack.c.l.b16 %v132
    %v227 = vpack.c.b16 %v224, %v223
    %v228 = vpack.c.b16 %v226, %v225
    %231 = vmatpush.bf16.msra.mxu0 0
    %232 = vmatpush.bf16.msra.mxu0 0
    %233 = vmatpush.bf16.msra.mxu0 0
    %234 = vmatpush.bf16.msra.mxu0 0
    %235 = vmatpush.bf16.msra.mxu0 0
    %236 = vmatpush.bf16.msra.mxu0 0
    %237 = vmatpush.bf16.msra.mxu0 %v228
    %238 = vmatpush.bf16.msra.mxu0 %v227
    %239 = vmatmul.bf16.gmra.mxu0 %v151
    %v240 = vpop.f32.mrf.mxu0
    %v241 = vadd.f32 0.0, %v240
    %v242 = vpop.f32.mrf.mxu0
    %v243 = vadd.f32 0.0, %v242
    %244 = vdwg.mxu0
    %v245 = vld [vmem:[%s4] sm:$0xf]
    %v246 = vld [vmem:[%s4 + $0x4] sm:$0xf]
    %v247 = vld [vmem:[%s4 + $0x8] sm:$0xf]
    %v248 = vld [vmem:[%s4 + $0xc] sm:$0xf]
    %v249 = vld [vmem:[%s4 + $0x10] sm:$0xf]
    %v250 = vld [vmem:[%s4 + $0x14] sm:$0xf]
    %v251 = vld [vmem:[%s4 + $0x18] sm:$0xf]
    %v252 = vld [vmem:[%s4 + $0x1c] sm:$0xf]
    %v253 = vld [vmem:[%s4 + $0x20] sm:$0xf]
    %v254 = vld [vmem:[%s4 + $0x24] sm:$0xf]
    %v255 = vld [vmem:[%s4 + $0x28] sm:$0xf]
    %v256 = vld [vmem:[%s4 + $0x2c] sm:$0xf]
    %v257 = vld [vmem:[%s4 + $0x30] sm:$0xf]
    %v258 = vld [vmem:[%s4 + $0x34] sm:$0xf]
    %v259 = vld [vmem:[%s4 + $0x38] sm:$0xf]
    %v260 = vld [vmem:[%s4 + $0x3c] sm:$0xf]
    %v265 = vunpack.c.l.b16 %v245
    %v266 = vunpack.c.l.b16 %v246
    %v267 = vunpack.c.l.b16 %v247
    %v268 = vunpack.c.l.b16 %v248
    %v269 = vpack.c.b16 %v266, %v265
    %v270 = vpack.c.b16 %v268, %v267
    %273 = vmatpush.bf16.msra.mxu0 0
    %274 = vmatpush.bf16.msra.mxu0 0
    %275 = vmatpush.bf16.msra.mxu0 0
    %276 = vmatpush.bf16.msra.mxu0 0
    %277 = vmatpush.bf16.msra.mxu0 0
    %278 = vmatpush.bf16.msra.mxu0 0
    %279 = vmatpush.bf16.msra.mxu0 %v270
    %280 = vmatpush.bf16.msra.mxu0 %v269
    %281 = vmatmul.bf16.gmra.mxu0 %v151
    %v282 = vpop.f32.mrf.mxu0
    %v283 = vadd.f32 0.0, %v282
    %v284 = vpop.f32.mrf.mxu0
    %v285 = vadd.f32 0.0, %v284
    %286 = vdwg.mxu0
    %v291 = vunpack.c.l.b16 %v249
    %v292 = vunpack.c.l.b16 %v250
    %v293 = vunpack.c.l.b16 %v251
    %v294 = vunpack.c.l.b16 %v252
    %v295 = vpack.c.b16 %v292, %v291
    %v296 = vpack.c.b16 %v294, %v293
    %299 = vmatpush.bf16.msra.mxu0 0
    %300 = vmatpush.bf16.msra.mxu0 0
    %301 = vmatpush.bf16.msra.mxu0 0
    %302 = vmatpush.bf16.msra.mxu0 0
    %303 = vmatpush.bf16.msra.mxu0 0
    %304 = vmatpush.bf16.msra.mxu0 0
    %305 = vmatpush.bf16.msra.mxu0 %v296
    %306 = vmatpush.bf16.msra.mxu0 %v295
    %307 = vmatmul.bf16.gmra.mxu0 %v151
    %v308 = vpop.f32.mrf.mxu0
    %v309 = vadd.f32 0.0, %v308
    %v310 = vpop.f32.mrf.mxu0
    %v311 = vadd.f32 0.0, %v310
    %312 = vdwg.mxu0
    %v317 = vunpack.c.l.b16 %v253
    %v318 = vunpack.c.l.b16 %v254
    %v319 = vunpack.c.l.b16 %v255
    %v320 = vunpack.c.l.b16 %v256
    %v321 = vpack.c.b16 %v318, %v317
    %v322 = vpack.c.b16 %v320, %v319
    %325 = vmatpush.bf16.msra.mxu0 0
    %326 = vmatpush.bf16.msra.mxu0 0
    %327 = vmatpush.bf16.msra.mxu0 0
    %328 = vmatpush.bf16.msra.mxu0 0
    %329 = vmatpush.bf16.msra.mxu0 0
    %330 = vmatpush.bf16.msra.mxu0 0
    %331 = vmatpush.bf16.msra.mxu0 %v322
    %332 = vmatpush.bf16.msra.mxu0 %v321
    %333 = vmatmul.bf16.gmra.mxu0 %v151
    %v334 = vpop.f32.mrf.mxu0
    %v335 = vadd.f32 0.0, %v334
    %v336 = vpop.f32.mrf.mxu0
    %v337 = vadd.f32 0.0, %v336
    %338 = vdwg.mxu0
    %v343 = vunpack.c.l.b16 %v257
    %v344 = vunpack.c.l.b16 %v258
    %v345 = vunpack.c.l.b16 %v259
    %v346 = vunpack.c.l.b16 %v260
    %v347 = vpack.c.b16 %v344, %v343
    %v348 = vpack.c.b16 %v346, %v345
    %351 = vmatpush.bf16.msra.mxu0 0
    %352 = vmatpush.bf16.msra.mxu0 0
    %353 = vmatpush.bf16.msra.mxu0 0
    %354 = vmatpush.bf16.msra.mxu0 0
    %355 = vmatpush.bf16.msra.mxu0 0
    %356 = vmatpush.bf16.msra.mxu0 0
    %357 = vmatpush.bf16.msra.mxu0 %v348
    %358 = vmatpush.bf16.msra.mxu0 %v347
    %359 = vmatmul.bf16.gmra.mxu0 %v151
    %v360 = vpop.f32.mrf.mxu0
    %v361 = vadd.f32 0.0, %v360
    %v362 = vpop.f32.mrf.mxu0
    %v363 = vadd.f32 0.0, %v362
    %364 = vdwg.mxu0
    %v365 = vld [vmem:[%s5] sm:$0xf]
    %v366 = vld [vmem:[%s5 + $0x4] sm:$0xf]
    %v367 = vld [vmem:[%s5 + $0x8] sm:$0xf]
    %v368 = vld [vmem:[%s5 + $0xc] sm:$0xf]
    %v369 = vld [vmem:[%s5 + $0x10] sm:$0xf]
    %v370 = vld [vmem:[%s5 + $0x14] sm:$0xf]
    %v371 = vld [vmem:[%s5 + $0x18] sm:$0xf]
    %v372 = vld [vmem:[%s5 + $0x1c] sm:$0xf]
    %v373 = vld [vmem:[%s5 + $0x20] sm:$0xf]
    %v374 = vld [vmem:[%s5 + $0x24] sm:$0xf]
    %v375 = vld [vmem:[%s5 + $0x28] sm:$0xf]
    %v376 = vld [vmem:[%s5 + $0x2c] sm:$0xf]
    %v377 = vld [vmem:[%s5 + $0x30] sm:$0xf]
    %v378 = vld [vmem:[%s5 + $0x34] sm:$0xf]
    %v379 = vld [vmem:[%s5 + $0x38] sm:$0xf]
    %v380 = vld [vmem:[%s5 + $0x3c] sm:$0xf]
    %v385 = vunpack.c.l.b16 %v365
    %v386 = vunpack.c.l.b16 %v366
    %v387 = vunpack.c.l.b16 %v367
    %v388 = vunpack.c.l.b16 %v368
    %v389 = vpack.c.b16 %v386, %v385
    %v390 = vpack.c.b16 %v388, %v387
    %393 = vmatpush.bf16.msra.mxu0 0
    %394 = vmatpush.bf16.msra.mxu0 0
    %395 = vmatpush.bf16.msra.mxu0 0
    %396 = vmatpush.bf16.msra.mxu0 0
    %397 = vmatpush.bf16.msra.mxu0 0
    %398 = vmatpush.bf16.msra.mxu0 0
    %399 = vmatpush.bf16.msra.mxu0 %v390
    %400 = vmatpush.bf16.msra.mxu0 %v389
    %401 = vmatmul.bf16.gmra.mxu0 %v151
    %v402 = vpop.f32.mrf.mxu0
    %v403 = vadd.f32 0.0, %v402
    %v404 = vpop.f32.mrf.mxu0
    %v405 = vadd.f32 0.0, %v404
    %406 = vdwg.mxu0
    %v411 = vunpack.c.l.b16 %v369
    %v412 = vunpack.c.l.b16 %v370
    %v413 = vunpack.c.l.b16 %v371
    %v414 = vunpack.c.l.b16 %v372
    %v415 = vpack.c.b16 %v412, %v411
    %v416 = vpack.c.b16 %v414, %v413
    %419 = vmatpush.bf16.msra.mxu0 0
    %420 = vmatpush.bf16.msra.mxu0 0
    %421 = vmatpush.bf16.msra.mxu0 0
    %422 = vmatpush.bf16.msra.mxu0 0
    %423 = vmatpush.bf16.msra.mxu0 0
    %424 = vmatpush.bf16.msra.mxu0 0
    %425 = vmatpush.bf16.msra.mxu0 %v416
    %426 = vmatpush.bf16.msra.mxu0 %v415
    %427 = vmatmul.bf16.gmra.mxu0 %v151
    %v428 = vpop.f32.mrf.mxu0
    %v429 = vadd.f32 0.0, %v428
    %v430 = vpop.f32.mrf.mxu0
    %v431 = vadd.f32 0.0, %v430
    %432 = vdwg.mxu0
    %v437 = vunpack.c.l.b16 %v373
    %v438 = vunpack.c.l.b16 %v374
    %v439 = vunpack.c.l.b16 %v375
    %v440 = vunpack.c.l.b16 %v376
    %v441 = vpack.c.b16 %v438, %v437
    %v442 = vpack.c.b16 %v440, %v439
    %445 = vmatpush.bf16.msra.mxu0 0
    %446 = vmatpush.bf16.msra.mxu0 0
    %447 = vmatpush.bf16.msra.mxu0 0
    %448 = vmatpush.bf16.msra.mxu0 0
    %449 = vmatpush.bf16.msra.mxu0 0
    %450 = vmatpush.bf16.msra.mxu0 0
    %451 = vmatpush.bf16.msra.mxu0 %v442
    %452 = vmatpush.bf16.msra.mxu0 %v441
    %453 = vmatmul.bf16.gmra.mxu0 %v151
    %v454 = vpop.f32.mrf.mxu0
    %v455 = vadd.f32 0.0, %v454
    %v456 = vpop.f32.mrf.mxu0
    %v457 = vadd.f32 0.0, %v456
    %458 = vdwg.mxu0
    %v463 = vunpack.c.l.b16 %v377
    %v464 = vunpack.c.l.b16 %v378
    %v465 = vunpack.c.l.b16 %v379
    %v466 = vunpack.c.l.b16 %v380
    %v467 = vpack.c.b16 %v464, %v463
    %v468 = vpack.c.b16 %v466, %v465
    %471 = vmatpush.bf16.msra.mxu0 0
    %472 = vmatpush.bf16.msra.mxu0 0
    %473 = vmatpush.bf16.msra.mxu0 0
    %474 = vmatpush.bf16.msra.mxu0 0
    %475 = vmatpush.bf16.msra.mxu0 0
    %476 = vmatpush.bf16.msra.mxu0 0
    %477 = vmatpush.bf16.msra.mxu0 %v468
    %478 = vmatpush.bf16.msra.mxu0 %v467
    %479 = vmatmul.bf16.gmra.mxu0 %v151
    %v480 = vpop.f32.mrf.mxu0
    %v481 = vadd.f32 0.0, %v480
    %v482 = vpop.f32.mrf.mxu0
    %v483 = vadd.f32 0.0, %v482
    %484 = vdwg.mxu0
    %v485 = vpack.c.bf16 %v163, %v163
    %v486 = vpack.c.bf16 %v165, %v165
    %v487 = vpack.c.bf16 %v189, %v189
    %v488 = vpack.c.bf16 %v191, %v191
    %v489 = vpack.c.bf16 %v215, %v215
    %v490 = vpack.c.bf16 %v217, %v217
    %v491 = vpack.c.bf16 %v241, %v241
    %v492 = vpack.c.bf16 %v243, %v243
    %v493 = vpack.c.bf16 %v283, %v283
    %v494 = vpack.c.bf16 %v285, %v285
    %v495 = vpack.c.bf16 %v309, %v309
    %v496 = vpack.c.bf16 %v311, %v311
    %v497 = vpack.c.bf16 %v335, %v335
    %v498 = vpack.c.bf16 %v337, %v337
    %v499 = vpack.c.bf16 %v361, %v361
    %v500 = vpack.c.bf16 %v363, %v363
    %v501 = vpack.c.bf16 %v403, %v403
    %v502 = vpack.c.bf16 %v405, %v405
    %v503 = vpack.c.bf16 %v429, %v429
    %v504 = vpack.c.bf16 %v431, %v431
    %v505 = vpack.c.bf16 %v455, %v455
    %v506 = vpack.c.bf16 %v457, %v457
    %v507 = vpack.c.bf16 %v481, %v481
    %v508 = vpack.c.bf16 %v483, %v483
    %vm509 = vcmask 64512
    %v511 = vsel %vm509, %v485, 0
    %v514 = vsel %vm509, %v493, 0
    %516 = vmatpush.bf16.xpose.msra.mxu0 0
    %517 = vmatpush.bf16.xpose.msra.mxu0 0
    %518 = vmatpush.bf16.xpose.msra.mxu0 0
    %519 = vmatpush.bf16.xpose.msra.mxu0 0
    %520 = vmatpush.bf16.xpose.msra.mxu0 0
    %521 = vmatpush.bf16.xpose.msra.mxu0 0
    %522 = vmatpush.bf16.xpose.msra.mxu0 0
    %523 = vmatpush.bf16.xpose.msra.mxu0 %v514
    %524 = vmatmul.bf16.gmra.mxu0 %v511
    %v525 = vpop.f32.mrf.mxu0
    %v526 = vadd.f32 0.0, %v525
    %v527 = vpop.f32.mrf.mxu0
    %528 = vdwg.mxu0
    %v530 = vsel %vm509, %v486, 0
    %v533 = vsel %vm509, %v494, 0
    %535 = vmatpush.bf16.xpose.msra.mxu0 0
    %536 = vmatpush.bf16.xpose.msra.mxu0 0
    %537 = vmatpush.bf16.xpose.msra.mxu0 0
    %538 = vmatpush.bf16.xpose.msra.mxu0 0
    %539 = vmatpush.bf16.xpose.msra.mxu0 0
    %540 = vmatpush.bf16.xpose.msra.mxu0 0
    %541 = vmatpush.bf16.xpose.msra.mxu0 0
    %542 = vmatpush.bf16.xpose.msra.mxu0 %v533
    %543 = vmatmul.bf16.gmra.mxu0 %v530
    %v544 = vpop.f32.mrf.mxu0
    %v545 = vadd.f32 0.0, %v544
    %v546 = vpop.f32.mrf.mxu0
    %547 = vdwg.mxu0
    %v549 = vsel %vm509, %v487, 0
    %v552 = vsel %vm509, %v495, 0
    %554 = vmatpush.bf16.xpose.msra.mxu0 0
    %555 = vmatpush.bf16.xpose.msra.mxu0 0
    %556 = vmatpush.bf16.xpose.msra.mxu0 0
    %557 = vmatpush.bf16.xpose.msra.mxu0 0
    %558 = vmatpush.bf16.xpose.msra.mxu0 0
    %559 = vmatpush.bf16.xpose.msra.mxu0 0
    %560 = vmatpush.bf16.xpose.msra.mxu0 0
    %561 = vmatpush.bf16.xpose.msra.mxu0 %v552
    %562 = vmatmul.bf16.gmra.mxu0 %v549
    %v563 = vpop.f32.mrf.mxu0
    %v564 = vadd.f32 0.0, %v563
    %v565 = vpop.f32.mrf.mxu0
    %566 = vdwg.mxu0
    %v568 = vsel %vm509, %v488, 0
    %v571 = vsel %vm509, %v496, 0
    %573 = vmatpush.bf16.xpose.msra.mxu0 0
    %574 = vmatpush.bf16.xpose.msra.mxu0 0
    %575 = vmatpush.bf16.xpose.msra.mxu0 0
    %576 = vmatpush.bf16.xpose.msra.mxu0 0
    %577 = vmatpush.bf16.xpose.msra.mxu0 0
    %578 = vmatpush.bf16.xpose.msra.mxu0 0
    %579 = vmatpush.bf16.xpose.msra.mxu0 0
    %580 = vmatpush.bf16.xpose.msra.mxu0 %v571
    %581 = vmatmul.bf16.gmra.mxu0 %v568
    %v582 = vpop.f32.mrf.mxu0
    %v583 = vadd.f32 0.0, %v582
    %v584 = vpop.f32.mrf.mxu0
    %585 = vdwg.mxu0
    %v587 = vsel %vm509, %v489, 0
    %v590 = vsel %vm509, %v497, 0
    %592 = vmatpush.bf16.xpose.msra.mxu0 0
    %593 = vmatpush.bf16.xpose.msra.mxu0 0
    %594 = vmatpush.bf16.xpose.msra.mxu0 0
    %595 = vmatpush.bf16.xpose.msra.mxu0 0
    %596 = vmatpush.bf16.xpose.msra.mxu0 0
    %597 = vmatpush.bf16.xpose.msra.mxu0 0
    %598 = vmatpush.bf16.xpose.msra.mxu0 0
    %599 = vmatpush.bf16.xpose.msra.mxu0 %v590
    %600 = vmatmul.bf16.gmra.mxu0 %v587
    %v601 = vpop.f32.mrf.mxu0
    %v602 = vadd.f32 0.0, %v601
    %v603 = vpop.f32.mrf.mxu0
    %604 = vdwg.mxu0
    %v606 = vsel %vm509, %v490, 0
    %v609 = vsel %vm509, %v498, 0
    %611 = vmatpush.bf16.xpose.msra.mxu0 0
    %612 = vmatpush.bf16.xpose.msra.mxu0 0
    %613 = vmatpush.bf16.xpose.msra.mxu0 0
    %614 = vmatpush.bf16.xpose.msra.mxu0 0
    %615 = vmatpush.bf16.xpose.msra.mxu0 0
    %616 = vmatpush.bf16.xpose.msra.mxu0 0
    %617 = vmatpush.bf16.xpose.msra.mxu0 0
    %618 = vmatpush.bf16.xpose.msra.mxu0 %v609
    %619 = vmatmul.bf16.gmra.mxu0 %v606
    %v620 = vpop.f32.mrf.mxu0
    %v621 = vadd.f32 0.0, %v620
    %v622 = vpop.f32.mrf.mxu0
    %623 = vdwg.mxu0
    %v625 = vsel %vm509, %v491, 0
    %v628 = vsel %vm509, %v499, 0
    %630 = vmatpush.bf16.xpose.msra.mxu0 0
    %631 = vmatpush.bf16.xpose.msra.mxu0 0
    %632 = vmatpush.bf16.xpose.msra.mxu0 0
    %633 = vmatpush.bf16.xpose.msra.mxu0 0
    %634 = vmatpush.bf16.xpose.msra.mxu0 0
    %635 = vmatpush.bf16.xpose.msra.mxu0 0
    %636 = vmatpush.bf16.xpose.msra.mxu0 0
    %637 = vmatpush.bf16.xpose.msra.mxu0 %v628
    %638 = vmatmul.bf16.gmra.mxu0 %v625
    %v639 = vpop.f32.mrf.mxu0
    %v640 = vadd.f32 0.0, %v639
    %v641 = vpop.f32.mrf.mxu0
    %642 = vdwg.mxu0
    %v644 = vsel %vm509, %v492, 0
    %v647 = vsel %vm509, %v500, 0
    %649 = vmatpush.bf16.xpose.msra.mxu0 0
    %650 = vmatpush.bf16.xpose.msra.mxu0 0
    %651 = vmatpush.bf16.xpose.msra.mxu0 0
    %652 = vmatpush.bf16.xpose.msra.mxu0 0
    %653 = vmatpush.bf16.xpose.msra.mxu0 0
    %654 = vmatpush.bf16.xpose.msra.mxu0 0
    %655 = vmatpush.bf16.xpose.msra.mxu0 0
    %656 = vmatpush.bf16.xpose.msra.mxu0 %v647
    %657 = vmatmul.bf16.gmra.mxu0 %v644
    %v658 = vpop.f32.mrf.mxu0
    %v659 = vadd.f32 0.0, %v658
    %v660 = vpop.f32.mrf.mxu0
    %661 = vdwg.mxu0
    %v662 = vmul.f32 %v526, 0.35355338
    %v663 = vmul.f32 %v545, 0.35355338
    %v664 = vmul.f32 %v564, 0.35355338
    %v665 = vmul.f32 %v583, 0.35355338
    %v666 = vmul.f32 %v602, 0.35355338
    %v667 = vmul.f32 %v621, 0.35355338
    %v668 = vmul.f32 %v640, 0.35355338
    %v669 = vmul.f32 %v659, 0.35355338
    %v670 = vsel %vm509, %v662, -inf
    %671 = vmax.xlane.f32.xlu0 %v670
    %v672 = vpop.xlane.xlu0 %671
    %v673 = vsel %vm509, %v663, -inf
    %674 = vmax.xlane.f32.xlu0 %v673
    %v675 = vpop.xlane.xlu0 %674
    %v676 = vsel %vm509, %v664, -inf
    %677 = vmax.xlane.f32.xlu0 %v676
    %v678 = vpop.xlane.xlu0 %677
    %v679 = vsel %vm509, %v665, -inf
    %680 = vmax.xlane.f32.xlu0 %v679
    %v681 = vpop.xlane.xlu0 %680
    %v682 = vsel %vm509, %v666, -inf
    %683 = vmax.xlane.f32.xlu0 %v682
    %v684 = vpop.xlane.xlu0 %683
    %v685 = vsel %vm509, %v667, -inf
    %686 = vmax.xlane.f32.xlu0 %v685
    %v687 = vpop.xlane.xlu0 %686
    %v688 = vsel %vm509, %v668, -inf
    %689 = vmax.xlane.f32.xlu0 %v688
    %v690 = vpop.xlane.xlu0 %689
    %v691 = vsel %vm509, %v669, -inf
    %692 = vmax.xlane.f32.xlu0 %v691
    %v693 = vpop.xlane.xlu0 %692
    %v694 = vsub.f32 %v662, %v672
    %v695 = vsub.f32 %v663, %v675
    %v696 = vsub.f32 %v664, %v678
    %v697 = vsub.f32 %v665, %v681
    %v698 = vsub.f32 %v666, %v684
    %v699 = vsub.f32 %v667, %v687
    %v700 = vsub.f32 %v668, %v690
    %v701 = vsub.f32 %v669, %v693
    %v702 = vmul.f32 %v694, 1.442695
    %v703 = vpow.pop %v702
    %v704 = vmul.f32 %v695, 1.442695
    %v705 = vpow.pop %v704
    %v706 = vmul.f32 %v696, 1.442695
    %v707 = vpow.pop %v706
    %v708 = vmul.f32 %v697, 1.442695
    %v709 = vpow.pop %v708
    %v710 = vmul.f32 %v698, 1.442695
    %v711 = vpow.pop %v710
    %v712 = vmul.f32 %v699, 1.442695
    %v713 = vpow.pop %v712
    %v714 = vmul.f32 %v700, 1.442695
    %v715 = vpow.pop %v714
    %v716 = vmul.f32 %v701, 1.442695
    %v717 = vpow.pop %v716
    %v718 = vsel %vm509, %v703, 0.0
    %719 = vadd.xlane.f32.xlu0 %v718
    %v720 = vpop.xlane.xlu0 %719
    %v721 = vsel %vm509, %v705, 0.0
    %722 = vadd.xlane.f32.xlu0 %v721
    %v723 = vpop.xlane.xlu0 %722
    %v724 = vsel %vm509, %v707, 0.0
    %725 = vadd.xlane.f32.xlu0 %v724
    %v726 = vpop.xlane.xlu0 %725
    %v727 = vsel %vm509, %v709, 0.0
    %728 = vadd.xlane.f32.xlu0 %v727
    %v729 = vpop.xlane.xlu0 %728
    %v730 = vsel %vm509, %v711, 0.0
    %731 = vadd.xlane.f32.xlu0 %v730
    %v732 = vpop.xlane.xlu0 %731
    %v733 = vsel %vm509, %v713, 0.0
    %734 = vadd.xlane.f32.xlu0 %v733
    %v735 = vpop.xlane.xlu0 %734
    %v736 = vsel %vm509, %v715, 0.0
    %737 = vadd.xlane.f32.xlu0 %v736
    %v738 = vpop.xlane.xlu0 %737
    %v739 = vsel %vm509, %v717, 0.0
    %740 = vadd.xlane.f32.xlu0 %v739
    %v741 = vpop.xlane.xlu0 %740
    %v742 = vrcp.pop %v720
    %v743 = vrcp.pop %v723
    %v744 = vrcp.pop %v726
    %v745 = vrcp.pop %v729
    %v746 = vrcp.pop %v732
    %v747 = vrcp.pop %v735
    %v748 = vrcp.pop %v738
    %v749 = vrcp.pop %v741
    %v750 = vmul.f32 %v703, %v742
    %v751 = vmul.f32 %v705, %v743
    %v752 = vmul.f32 %v707, %v744
    %v753 = vmul.f32 %v709, %v745
    %v754 = vmul.f32 %v711, %v746
    %v755 = vmul.f32 %v713, %v747
    %v756 = vmul.f32 %v715, %v748
    %v757 = vmul.f32 %v717, %v749
    %v758 = vpack.c.bf16 %v750, %v750
    %v759 = vpack.c.bf16 %v751, %v751
    %v760 = vpack.c.bf16 %v752, %v752
    %v761 = vpack.c.bf16 %v753, %v753
    %v762 = vpack.c.bf16 %v754, %v754
    %v763 = vpack.c.bf16 %v755, %v755
    %v764 = vpack.c.bf16 %v756, %v756
    %v765 = vpack.c.bf16 %v757, %v757
    %v767 = vsel %vm509, %v758, 0
    %vm769 = vcmask 1043456
    %v771 = vsel %vm769, %v501, 0
    %773 = vmatpush.bf16.msra.mxu0 0
    %774 = vmatpush.bf16.msra.mxu0 0
    %775 = vmatpush.bf16.msra.mxu0 0
    %776 = vmatpush.bf16.msra.mxu0 0
    %777 = vmatpush.bf16.msra.mxu0 0
    %778 = vmatpush.bf16.msra.mxu0 0
    %779 = vmatpush.bf16.msra.mxu0 0
    %780 = vmatpush.bf16.msra.mxu0 %v771
    %781 = vmatmul.bf16.gmra.mxu0 %v767
    %v782 = vpop.f32.mrf.mxu0
    %v783 = vadd.f32 0.0, %v782
    %v784 = vpop.f32.mrf.mxu0
    %785 = vdwg.mxu0
    %v787 = vsel %vm509, %v759, 0
    %v790 = vsel %vm769, %v502, 0
    %792 = vmatpush.bf16.msra.mxu0 0
    %793 = vmatpush.bf16.msra.mxu0 0
    %794 = vmatpush.bf16.msra.mxu0 0
    %795 = vmatpush.bf16.msra.mxu0 0
    %796 = vmatpush.bf16.msra.mxu0 0
    %797 = vmatpush.bf16.msra.mxu0 0
    %798 = vmatpush.bf16.msra.mxu0 0
    %799 = vmatpush.bf16.msra.mxu0 %v790
    %800 = vmatmul.bf16.gmra.mxu0 %v787
    %v801 = vpop.f32.mrf.mxu0
    %v802 = vadd.f32 0.0, %v801
    %v803 = vpop.f32.mrf.mxu0
    %804 = vdwg.mxu0
    %v806 = vsel %vm509, %v760, 0
    %v809 = vsel %vm769, %v503, 0
    %811 = vmatpush.bf16.msra.mxu0 0
    %812 = vmatpush.bf16.msra.mxu0 0
    %813 = vmatpush.bf16.msra.mxu0 0
    %814 = vmatpush.bf16.msra.mxu0 0
    %815 = vmatpush.bf16.msra.mxu0 0
    %816 = vmatpush.bf16.msra.mxu0 0
    %817 = vmatpush.bf16.msra.mxu0 0
    %818 = vmatpush.bf16.msra.mxu0 %v809
    %819 = vmatmul.bf16.gmra.mxu0 %v806
    %v820 = vpop.f32.mrf.mxu0
    %v821 = vadd.f32 0.0, %v820
    %v822 = vpop.f32.mrf.mxu0
    %823 = vdwg.mxu0
    %v825 = vsel %vm509, %v761, 0
    %v828 = vsel %vm769, %v504, 0
    %830 = vmatpush.bf16.msra.mxu0 0
    %831 = vmatpush.bf16.msra.mxu0 0
    %832 = vmatpush.bf16.msra.mxu0 0
    %833 = vmatpush.bf16.msra.mxu0 0
    %834 = vmatpush.bf16.msra.mxu0 0
    %835 = vmatpush.bf16.msra.mxu0 0
    %836 = vmatpush.bf16.msra.mxu0 0
    %837 = vmatpush.bf16.msra.mxu0 %v828
    %838 = vmatmul.bf16.gmra.mxu0 %v825
    %v839 = vpop.f32.mrf.mxu0
    %v840 = vadd.f32 0.0, %v839
    %v841 = vpop.f32.mrf.mxu0
    %842 = vdwg.mxu0
    %v844 = vsel %vm509, %v762, 0
    %v847 = vsel %vm769, %v505, 0
    %849 = vmatpush.bf16.msra.mxu0 0
    %850 = vmatpush.bf16.msra.mxu0 0
    %851 = vmatpush.bf16.msra.mxu0 0
    %852 = vmatpush.bf16.msra.mxu0 0
    %853 = vmatpush.bf16.msra.mxu0 0
    %854 = vmatpush.bf16.msra.mxu0 0
    %855 = vmatpush.bf16.msra.mxu0 0
    %856 = vmatpush.bf16.msra.mxu0 %v847
    %857 = vmatmul.bf16.gmra.mxu0 %v844
    %v858 = vpop.f32.mrf.mxu0
    %v859 = vadd.f32 0.0, %v858
    %v860 = vpop.f32.mrf.mxu0
    %861 = vdwg.mxu0
    %v863 = vsel %vm509, %v763, 0
    %v866 = vsel %vm769, %v506, 0
    %868 = vmatpush.bf16.msra.mxu0 0
    %869 = vmatpush.bf16.msra.mxu0 0
    %870 = vmatpush.bf16.msra.mxu0 0
    %871 = vmatpush.bf16.msra.mxu0 0
    %872 = vmatpush.bf16.msra.mxu0 0
    %873 = vmatpush.bf16.msra.mxu0 0
    %874 = vmatpush.bf16.msra.mxu0 0
    %875 = vmatpush.bf16.msra.mxu0 %v866
    %876 = vmatmul.bf16.gmra.mxu0 %v863
    %v877 = vpop.f32.mrf.mxu0
    %v878 = vadd.f32 0.0, %v877
    %v879 = vpop.f32.mrf.mxu0
    %880 = vdwg.mxu0
    %v882 = vsel %vm509, %v764, 0
    %v885 = vsel %vm769, %v507, 0
    %887 = vmatpush.bf16.msra.mxu0 0
    %888 = vmatpush.bf16.msra.mxu0 0
    %889 = vmatpush.bf16.msra.mxu0 0
    %890 = vmatpush.bf16.msra.mxu0 0
    %891 = vmatpush.bf16.msra.mxu0 0
    %892 = vmatpush.bf16.msra.mxu0 0
    %893 = vmatpush.bf16.msra.mxu0 0
    %894 = vmatpush.bf16.msra.mxu0 %v885
    %895 = vmatmul.bf16.gmra.mxu0 %v882
    %v896 = vpop.f32.mrf.mxu0
    %v897 = vadd.f32 0.0, %v896
    %v898 = vpop.f32.mrf.mxu0
    %899 = vdwg.mxu0
    %v901 = vsel %vm509, %v765, 0
    %v904 = vsel %vm769, %v508, 0
    %906 = vmatpush.bf16.msra.mxu0 0
    %907 = vmatpush.bf16.msra.mxu0 0
    %908 = vmatpush.bf16.msra.mxu0 0
    %909 = vmatpush.bf16.msra.mxu0 0
    %910 = vmatpush.bf16.msra.mxu0 0
    %911 = vmatpush.bf16.msra.mxu0 0
    %912 = vmatpush.bf16.msra.mxu0 0
    %913 = vmatpush.bf16.msra.mxu0 %v904
    %914 = vmatmul.bf16.gmra.mxu0 %v901
    %v915 = vpop.f32.mrf.mxu0
    %v916 = vadd.f32 0.0, %v915
    %v917 = vpop.f32.mrf.mxu0
    %918 = vdwg.mxu0
    %919 = vst.msk [vmem:[#allocation2] sm:$0xff] %vm509, %v783
    %920 = vst.msk [vmem:[#allocation2 + $0x8] sm:$0xff] %vm509, %v802
    %923 = vrot.lane.b32.xlu0 %v821, 8
    %v924 = vpop.permute.xlu0 %923
    %925 = vrot.lane.b32.xlu0 %v840, 8
    %v926 = vpop.permute.xlu0 %925
    %vm929 = vcmask 130112
    %930 = vst.msk [vmem:[#allocation2] sm:$0xff] %vm929, %v924
    %931 = vst.msk [vmem:[#allocation2 + $0x8] sm:$0xff] %vm929, %v926
    %934 = vrot.lane.b32.xlu0 %v859, 16
    %v935 = vpop.permute.xlu0 %934
    %936 = vrot.lane.b32.xlu0 %v878, 16
    %v937 = vpop.permute.xlu0 %936
    %vm940 = vcmask 195712
    %941 = vst.msk [vmem:[#allocation2] sm:$0xff] %vm940, %v935
    %942 = vst.msk [vmem:[#allocation2 + $0x8] sm:$0xff] %vm940, %v937
    %945 = vrot.lane.b32.xlu0 %v897, 24
    %v946 = vpop.permute.xlu0 %945
    %947 = vrot.lane.b32.xlu0 %v916, 24
    %v948 = vpop.permute.xlu0 %947
    %vm951 = vcmask 261312
    %952 = vst.msk [vmem:[#allocation2] sm:$0xff] %vm951, %v946
    %953 = vst.msk [vmem:[#allocation2 + $0x8] sm:$0xff] %vm951, %v948
    %v954 = vld [vmem:[#allocation2] sm:$0xff]
    %v955 = vld [vmem:[#allocation2 + $0x8] sm:$0xff]
    %v956 = vpack.c.bf16 %v955, %v954
    %v957 = vld [vmem:[%s6] sm:$0xf]
    %v958 = vld [vmem:[%s6 + $0x4] sm:$0xf]
    %v959 = vld [vmem:[%s6 + $0x8] sm:$0xf]
    %v960 = vld [vmem:[%s6 + $0xc] sm:$0xf]
    %v961 = vld [vmem:[%s7] sm:$0x1]
    %v963 = vperm.slane %v961, 0
    %v969 = vunpack.c.l.b16 %v957
    %v970 = vunpack.c.l.b16 %v958
    %v971 = vunpack.c.l.b16 %v959
    %v972 = vunpack.c.l.b16 %v960
    %v973 = vpack.c.b16 %v970, %v969
    %v974 = vpack.c.b16 %v972, %v971
    %v978 = vsel %vm53, %v956, 0
    %980 = vmatpush.bf16.msra.mxu0 0
    %981 = vmatpush.bf16.msra.mxu0 0
    %982 = vmatpush.bf16.msra.mxu0 0
    %983 = vmatpush.bf16.msra.mxu0 0
    %984 = vmatpush.bf16.msra.mxu0 0
    %985 = vmatpush.bf16.msra.mxu0 0
    %986 = vmatpush.bf16.msra.mxu0 %v974
    %987 = vmatpush.bf16.msra.mxu0 %v973
    %988 = vmatmul.bf16.gmra.mxu0 %v978
    %v989 = vpop.f32.mrf.mxu0
    %v990 = vadd.f32 %v963, %v989
    %v991 = vpop.f32.mrf.mxu0
    %v992 = vadd.f32 %v963, %v991
    %993 = vdwg.mxu0
    %v994 = vadd.f32 %v49, %v990
    %v995 = vadd.f32 %v50, %v992
    %v996 = vld [vmem:[%s8] sm:$0x1]
    %v997 = vld [vmem:[%s9] sm:$0x1]
    %v998 = vsel %vm53, %v994, 0.0
    %999 = vadd.xlane.f32.xlu0 %v998
    %v1000 = vpop.xlane.xlu0 %999
    %v1001 = vsel %vm53, %v995, 0.0
    %1002 = vadd.xlane.f32.xlu0 %v1001
    %v1003 = vpop.xlane.xlu0 %1002
    %v1004 = vmul.f32 %v1000, %v66
    %v1005 = vmul.f32 %v1003, %v66
    %v1006 = vsub.f32 %v994, %v1004
    %v1007 = vsub.f32 %v995, %v1005
    %v1008 = vmul.f32 %v1006, %v1006
    %v1009 = vmul.f32 %v1007, %v1007
    %v1010 = vsel %vm53, %v1008, 0.0
    %1011 = vadd.xlane.f32.xlu0 %v1010
    %v1012 = vpop.xlane.xlu0 %1011
    %v1013 = vsel %vm53, %v1009, 0.0
    %1014 = vadd.xlane.f32.xlu0 %v1013
    %v1015 = vpop.xlane.xlu0 %1014
    %v1016 = vmul.f32 %v1012, %v66
    %v1017 = vmul.f32 %v1015, %v66
    %v1018 = vadd.f32 %v1016, 1e-05
    %v1019 = vadd.f32 %v1017, 1e-05
    %v1020 = vrsqrt.pop %v1018
    %v1021 = vmul.f32 %v1020, %v1018
    %v1022 = vmul.f32 %v1021, %v1020
    %v1023 = vmul.f32 0.5, %v1022
    %v1024 = vsub.f32 1.5, %v1023
    %v1025 = vmul.f32 %v1020, %v1024
    %vm1026 = vweird.f32 %v1018
    %vm1027 = vweird.f32 %v1020
    %vm1028 = vmor %vm1026, %vm1027
    %v1029 = vsel %vm1028, %v1020, %v1025
    %v1030 = vrsqrt.pop %v1019
    %v1031 = vmul.f32 %v1030, %v1019
    %v1032 = vmul.f32 %v1031, %v1030
    %v1033 = vmul.f32 0.5, %v1032
    %v1034 = vsub.f32 1.5, %v1033
    %v1035 = vmul.f32 %v1030, %v1034
    %vm1036 = vweird.f32 %v1019
    %vm1037 = vweird.f32 %v1030
    %vm1038 = vmor %vm1036, %vm1037
    %v1039 = vsel %vm1038, %v1030, %v1035
    %v1040 = vmul.f32 %v1006, %v1029
    %v1041 = vmul.f32 %v1007, %v1039
    %v1043 = vperm.slane %v996, 0
    %v1045 = vmul.f32 %v1040, %v1043
    %v1046 = vmul.f32 %v1041, %v1043
    %v1048 = vperm.slane %v997, 0
    %v1050 = vadd.f32 %v1045, %v1048
    %v1051 = vadd.f32 %v1046, %v1048
    %v1052 = vpack.c.bf16 %v1051, %v1050
    %v1053 = vld [vmem:[%s10] sm:$0xf]
    %v1054 = vld [vmem:[%s10 + $0x4] sm:$0xf]
    %v1055 = vld [vmem:[%s10 + $0x8] sm:$0xf]
    %v1056 = vld [vmem:[%s10 + $0xc] sm:$0xf]
    %v1057 = vld [vmem:[%s11] sm:$0x1]
    %v1059 = vperm.slane %v1057, 0
    %v1065 = vunpack.c.l.b16 %v1053
    %v1066 = vunpack.c.l.b16 %v1054
    %v1067 = vunpack.c.l.b16 %v1055
    %v1068 = vunpack.c.l.b16 %v1056
    %v1069 = vpack.c.b16 %v1066, %v1065
    %v1070 = vpack.c.b16 %v1068, %v1067
    %v1074 = vsel %vm53, %v1052, 0
    %1076 = vmatpush.bf16.msra.mxu0 0
    %1077 = vmatpush.bf16.msra.mxu0 0
    %1078 = vmatpush.bf16.msra.mxu0 0
    %1079 = vmatpush.bf16.msra.mxu0 0
    %1080 = vmatpush.bf16.msra.mxu0 0
    %1081 = vmatpush.bf16.msra.mxu0 0
    %1082 = vmatpush.bf16.msra.mxu0 %v1070
    %1083 = vmatpush.bf16.msra.mxu0 %v1069
    %1084 = vmatmul.bf16.gmra.mxu0 %v1074
    %v1085 = vpop.f32.mrf.mxu0
    %v1086 = vadd.f32 %v1059, %v1085
    %v1087 = vpop.f32.mrf.mxu0
    %v1088 = vadd.f32 %v1059, %v1087
    %1089 = vdwg.mxu0
    %v1090 = vmul.f32 %v1086, 0.5
    %v1091 = vmul.f32 %v1088, 0.5
    %v1092 = vmul.f32 %v1086, 0.044715
    %v1093 = vmul.f32 %v1088, 0.044715
    %v1094 = vmul.f32 %v1092, %v1086
    %v1095 = vmul.f32 %v1093, %v1088
    %v1096 = vmul.f32 %v1094, %v1086
    %v1097 = vmul.f32 %v1095, %v1088
    %v1098 = vadd.f32 %v1086, %v1096
    %v1099 = vadd.f32 %v1088, %v1097
    %v1100 = vmul.f32 %v1098, 0.7978846
    %v1101 = vmul.f32 %v1099, 0.7978846
    %v1102 = vtanh.pop %v1100
    %v1103 = vtanh.pop %v1101
    %v1104 = vadd.f32 %v1102, 1.0
    %v1105 = vadd.f32 %v1103, 1.0
    %v1106 = vmul.f32 %v1090, %v1104
    %v1107 = vmul.f32 %v1091, %v1105
    %v1108 = vpack.c.bf16 %v1107, %v1106
    %v1109 = vld [vmem:[%s12] sm:$0xf]
    %v1110 = vld [vmem:[%s12 + $0x4] sm:$0xf]
    %v1111 = vld [vmem:[%s12 + $0x8] sm:$0xf]
    %v1112 = vld [vmem:[%s12 + $0xc] sm:$0xf]
    %v1113 = vld [vmem:[%s12 + $0x10] sm:$0xf]
    %v1114 = vld [vmem:[%s12 + $0x14] sm:$0xf]
    %v1115 = vld [vmem:[%s12 + $0x18] sm:$0xf]
    %v1116 = vld [vmem:[%s12 + $0x1c] sm:$0xf]
    %v1117 = vld [vmem:[%s12 + $0x20] sm:$0xf]
    %v1118 = vld [vmem:[%s12 + $0x24] sm:$0xf]
    %v1119 = vld [vmem:[%s12 + $0x28] sm:$0xf]
    %v1120 = vld [vmem:[%s12 + $0x2c] sm:$0xf]
    %v1121 = vld [vmem:[%s12 + $0x30] sm:$0xf]
    %v1122 = vld [vmem:[%s12 + $0x34] sm:$0xf]
    %v1123 = vld [vmem:[%s12 + $0x38] sm:$0xf]
    %v1124 = vld [vmem:[%s12 + $0x3c] sm:$0xf]
    %v1125 = vld [vmem:[%s13] sm:$0x1]
    %v1127 = vperm.slane %v1125, 0
    %v1145 = vunpack.c.l.b16 %v1109
    %v1146 = vunpack.c.l.b16 %v1110
    %v1147 = vunpack.c.l.b16 %v1111
    %v1148 = vunpack.c.l.b16 %v1112
    %v1149 = vunpack.c.l.b16 %v1113
    %v1150 = vunpack.c.l.b16 %v1114
    %v1151 = vunpack.c.l.b16 %v1115
    %v1152 = vunpack.c.l.b16 %v1116
    %v1153 = vunpack.c.l.b16 %v1117
    %v1154 = vunpack.c.l.b16 %v1118
    %v1155 = vunpack.c.l.b16 %v1119
    %v1156 = vunpack.c.l.b16 %v1120
    %v1157 = vunpack.c.l.b16 %v1121
    %v1158 = vunpack.c.l.b16 %v1122
    %v1159 = vunpack.c.l.b16 %v1123
    %v1160 = vunpack.c.l.b16 %v1124
    %v1161 = vpack.c.b16 %v1146, %v1145
    %v1162 = vpack.c.b16 %v1148, %v1147
    %v1163 = vpack.c.b16 %v1150, %v1149
    %v1164 = vpack.c.b16 %v1152, %v1151
    %v1165 = vpack.c.b16 %v1154, %v1153
    %v1166 = vpack.c.b16 %v1156, %v1155
    %v1167 = vpack.c.b16 %v1158, %v1157
    %v1168 = vpack.c.b16 %v1160, %v1159
    %1177 = vmatpush.bf16.msra.mxu0 %v1168
    %1178 = vmatpush.bf16.msra.mxu0 %v1167
    %1179 = vmatpush.bf16.msra.mxu0 %v1166
    %1180 = vmatpush.bf16.msra.mxu0 %v1165
    %1181 = vmatpush.bf16.msra.mxu0 %v1164
    %1182 = vmatpush.bf16.msra.mxu0 %v1163
    %1183 = vmatpush.bf16.msra.mxu0 %v1162
    %1184 = vmatpush.bf16.msra.mxu0 %v1161
    %1185 = vmatmul.bf16.gmra.mxu0 %v1108
    %v1186 = vpop.f32.mrf.mxu0
    %v1187 = vadd.f32 %v1127, %v1186
    %v1188 = vpop.f32.mrf.mxu0
    %v1189 = vadd.f32 %v1127, %v1188
    %1190 = vdwg.mxu0
    %v1191 = vadd.f32 %v994, %v1187
    %v1192 = vadd.f32 %v995, %v1189
    %1193 = vst.msk [vmem:[#allocation3] sm:$0xff] %vm53, %v1191
    %1194 = vst.msk [vmem:[#allocation3 + $0x8] sm:$0xff] %vm53, %v1192
    // Predicated region
    $region58: #{tpu_custom_call.1} parent=1 // pred_check
      _
    $region59: #{tpu_custom_call.1} parent=1 // pred_check_branch
      %1196 = sbr.rel (0) target = $region61
    $region60: #{tpu_custom_call.1} parent=1 // pred_region
      %1198 = vsyncadd [#allocation4], 0
      %s1199 = sshll.u32 [#allocation3], 4
      %s1200 = int_to_ptr.vmem [resolvable:$true] %s1199
      %s1201 = sshll.u32 %s14, 4
      %s1202 = int_to_ptr.hbm [resolvable:$true] %s1201
      %1207 = dma.vmem_to_hbm [thread:$0]  %s1200, 256, %s1202, [#allocation4], 128, 128, 8
    $region61: #{tpu_custom_call.1} parent=1 // pred_fallthru
      _
    // Predicated region
    $region62: #{tpu_custom_call.1} parent=1 // pred_check
      _
    $region63: #{tpu_custom_call.1} parent=1 // pred_check_branch
      %1209 = sbr.rel (0) target = $region65
    $region64: #{tpu_custom_call.1} parent=1 // pred_region
      %1211 = dma.done [#allocation4], 256
    $region65: #{tpu_custom_call.1} parent=1 // pred_fallthru
      _
    %1212 = vsyncpa [#allocation4], 1

</llo_original>
